<compile_context>
chip_gen: v7x
topology: tpu7x:2x2x1
jax: 0.10.0
libtpu: 0.0.40
codegen_flags: <defaults>
</compile_context>

<pallas_src>
import jax
import jax.numpy as jnp
from jax.experimental import pallas as pl
from jax.experimental.pallas import tpu as pltpu


def critic_kernel(scal_ref, xT_ref, w1T_ref, w2T_ref, slab_ref, o_ref):
    """One lane-dense batch tile of Critic.forward (batch on lanes).

    scal_ref : SMEM (3,)              f32  -> [prelu1_slope, prelu2_slope, b3]
    xT_ref   : VMEM (obs_dim, bt)          -> input rows transposed (batch on lanes)
    w1T_ref  : VMEM (hidden, obs_dim)
    w2T_ref  : VMEM (hidden, hidden)
    slab_ref : VMEM (hidden, 3)            -> columns [b1, b2, w3]
    o_ref    : VMEM (1, bt)                -> lane-dense output row
    """
    xT = xT_ref[...]                                   # (obs, bt)

    # F.normalize(x, dim=1, eps=1e-12):  x / max(||x||, 1e-12)
    #   == x * rsqrt(max(||x||^2, 1e-24))   (4-sublane reduce + EUP rsqrt + VPU mul)
    sq = jnp.sum(xT * xT, axis=0, keepdims=True)       # (1, bt)
    xnT = xT * jax.lax.rsqrt(jnp.maximum(sq, 1e-24))

    b1 = slab_ref[:, 0:1]                              # (hidden, 1), broadcast over lanes
    b2 = slab_ref[:, 1:2]
    w3 = slab_ref[:, 2:3]
    a1 = scal_ref[0]                                   # PReLU slopes / final bias: SMEM scalars
    a2 = scal_ref[1]
    b3 = scal_ref[2]

    # Linear 1 + PReLU (single shared slope, PyTorch default num_parameters=1)
    h1 = jnp.dot(w1T_ref[...], xnT, preferred_element_type=jnp.float32) + b1   # (hidden, bt)
    h1 = jnp.where(h1 >= 0.0, h1, a1 * h1)

    # Linear 2 + PReLU
    h2 = jnp.dot(w2T_ref[...], h1, preferred_element_type=jnp.float32) + b2    # (hidden, bt)
    h2 = jnp.where(h2 >= 0.0, h2, a2 * h2)

    # Linear 3 (hidden -> 1): broadcast multiply + sublane reduce -> lane-dense (1, bt)
    out = jnp.sum(h2 * w3, axis=0, keepdims=True) + b3
    o_ref[...] = out.astype(o_ref.dtype)


def _round_up(v, m):
    return ((v + m - 1) // m) * m


def critic_forward(x, params, *, batch_tile=None):
    (w1, b1, a1, w2, b2, a2, w3, b3) = params
    batch, obs_dim = x.shape
    hidden = w1.shape[1]

    # Lane-dense tiles: batch_tile is a multiple of 128.  One grid step up to ~4K rows;
    # for larger batches use an even number of steps so v7x megacore gets balanced work.
    if batch_tile is None:
        if batch <= 4096:
            batch_tile = _round_up(batch, 128)
        else:
            steps = pl.cdiv(batch, 4096)
            steps += steps % 2                      # even step count for the 2-TC v7x
            batch_tile = _round_up(pl.cdiv(batch, steps), 128)
    batch_tile = max(128, _round_up(batch_tile, 128))
    padded = pl.cdiv(batch, batch_tile) * batch_tile
    if padded != batch:
        x = jnp.pad(x, ((0, padded - batch), (0, 0)))
    grid = (padded // batch_tile,)

    # Transposed dataflow: batch on lanes everywhere.
    xT = x.T                                          # (obs_dim, padded)
    w1T = w1.T                                        # (hidden, obs_dim)
    w2T = w2.T                                        # (hidden, hidden)

    # Pack the five tiny parameter tensors into two arrays (2 DMAs instead of 7).
    slab = jnp.concatenate(
        [b1.reshape(hidden, 1), b2.reshape(hidden, 1), w3.reshape(hidden, 1)], axis=1)
    scalars = jnp.stack(
        [a1.reshape(()), a2.reshape(()), b3.reshape(())]).astype(jnp.float32)

    smem = pl.BlockSpec(memory_space=pltpu.MemorySpace.SMEM)
    out = pl.pallas_call(
        critic_kernel,
        out_shape=jax.ShapeDtypeStruct((1, padded), jnp.float32),
        grid=grid,
        in_specs=[
            smem,                                                      # scalars -> SMEM
            pl.BlockSpec((obs_dim, batch_tile), lambda i: (0, i)),     # xT, blocked on lanes
            pl.BlockSpec((hidden, obs_dim), lambda i: (0, 0)),         # w1T (unblocked)
            pl.BlockSpec((hidden, hidden), lambda i: (0, 0)),          # w2T (unblocked)
            pl.BlockSpec((hidden, 3), lambda i: (0, 0)),               # [b1 | b2 | w3]
        ],
        out_specs=pl.BlockSpec((1, batch_tile), lambda i: (0, i)),     # lane-dense output
        compiler_params=pltpu.CompilerParams(
            dimension_semantics=("parallel",)),
    )(scalars, xT, w1T, w2T, slab)
    return out[0, :batch].reshape(batch, 1)


def init_params(key, obs_dim, hidden):
    # Deterministic init mimicking nn.Linear defaults: U(-1/sqrt(fan_in), 1/sqrt(fan_in)).
    k1, k2, k3, k4, k5, k6 = jax.random.split(key, 6)

    def lin(kw, kb, fan_in, fan_out):
        bound = 1.0 / jnp.sqrt(jnp.float32(fan_in))
        w = jax.random.uniform(kw, (fan_in, fan_out), jnp.float32, -bound, bound)
        b = jax.random.uniform(kb, (1, fan_out), jnp.float32, -bound, bound)
        return w, b

    w1, b1 = lin(k1, k2, obs_dim, hidden)
    w2, b2 = lin(k3, k4, hidden, hidden)
    w3, b3 = lin(k5, k6, hidden, 1)
    # PReLU default slope = 0.25 (PyTorch num_parameters=1)
    a1 = jnp.float32(0.25)
    a2 = jnp.float32(0.25)
    return (w1, b1, a1, w2, b2, a2, w3, b3)


def reference_forward(x, params):
    (w1, b1, a1, w2, b2, a2, w3, b3) = params
    norm = jnp.sqrt(jnp.sum(x * x, axis=1, keepdims=True))
    xn = x / jnp.maximum(norm, 1e-12)
    h1 = xn @ w1 + b1
    h1 = jnp.where(h1 >= 0, h1, a1 * h1)
    h2 = h1 @ w2 + b2
    h2 = jnp.where(h2 >= 0, h2, a2 * h2)
    return h2 @ w3 + b3


if __name__ == "__main__":
    obs_dim, hidden, batch = 4, 32, 16   # CartPole observation_space_size=4
    key = jax.random.PRNGKey(0)
    kx, kp = jax.random.split(key)
    x = jax.random.normal(kx, (batch, obs_dim), jnp.float32)
    params = init_params(kp, obs_dim, hidden)

    out = critic_forward(x, params)      # grid=(1,): whole batch in one lane-dense tile
    out = jax.block_until_ready(out)

    ref = reference_forward(x, params)
    assert out.shape == (batch, 1)
    assert jnp.allclose(out, ref, atol=1e-4, rtol=1e-4), (out, ref)
    print("KERNEL_OK")
</pallas_src>

<mosaic_0001>
module attributes {stable_mosaic.version = 11 : i64} {
  func.func @critic_kernel(%arg0: i32, %arg1: memref<3xf32, #tpu.memory_space<smem>>, %arg2: memref<4x128xf32, #tpu.memory_space<vmem>>, %arg3: memref<32x4xf32, #tpu.memory_space<vmem>>, %arg4: memref<32x32xf32, #tpu.memory_space<vmem>>, %arg5: memref<32x3xf32, #tpu.memory_space<vmem>>, %arg6: memref<1x128xf32, #tpu.memory_space<vmem>>) attributes {dimension_semantics = [#tpu.dimension_semantics<parallel>], iteration_bounds = array<i64: 1>, scalar_prefetch = 0 : i64, scratch_operands = 0 : i64, tpu.core_type = #tpu.core_type<tc>, window_params = [{transform_indices = @transform_0, window_bounds = array<i64: 3>}, {transform_indices = @transform_1, window_bounds = array<i64: 4, 128>}, {pipeline_mode = #tpu.pipeline_mode<synchronous>, transform_indices = @transform_2, window_bounds = array<i64: 32, 4>}, {pipeline_mode = #tpu.pipeline_mode<synchronous>, transform_indices = @transform_3, window_bounds = array<i64: 32, 32>}, {pipeline_mode = #tpu.pipeline_mode<synchronous>, transform_indices = @transform_4, window_bounds = array<i64: 32, 3>}, {transform_indices = @transform_5, window_bounds = array<i64: 1, 128>}]} {
    %c0 = arith.constant 0 : index
    %c0_0 = arith.constant 0 : index
    %0 = vector.load %arg2[%c0, %c0_0] : memref<4x128xf32, #tpu.memory_space<vmem>>, vector<4x128xf32>
    %1 = arith.mulf %0, %0 : vector<4x128xf32>
    %cst = arith.constant dense<0.000000e+00> : vector<128xf32>
    %2 = vector.multi_reduction <add>, %1, %cst [0] : vector<4x128xf32> to vector<128xf32>
    %3 = vector.shape_cast %2 : vector<128xf32> to vector<1x128xf32>
    %cst_1 = arith.constant 1.000000e-24 : f32
    %4 = vector.broadcast %cst_1 : f32 to vector<1x128xf32>
    %5 = arith.maximumf %3, %4 : vector<1x128xf32>
    %6 = math.rsqrt %5 : vector<1x128xf32>
    %7 = vector.broadcast %6 : vector<1x128xf32> to vector<4x128xf32>
    %8 = arith.mulf %0, %7 : vector<4x128xf32>
    %c0_2 = arith.constant 0 : index
    %c0_3 = arith.constant 0 : index
    %9 = vector.load %arg5[%c0_2, %c0_3] : memref<32x3xf32, #tpu.memory_space<vmem>>, vector<32x1xf32>
    %c0_4 = arith.constant 0 : index
    %c1 = arith.constant 1 : index
    %10 = vector.load %arg5[%c0_4, %c1] : memref<32x3xf32, #tpu.memory_space<vmem>>, vector<32x1xf32>
    %c0_5 = arith.constant 0 : index
    %c2 = arith.constant 2 : index
    %11 = vector.load %arg5[%c0_5, %c2] : memref<32x3xf32, #tpu.memory_space<vmem>>, vector<32x1xf32>
    %c0_6 = arith.constant 0 : index
    %12 = memref.load %arg1[%c0_6] : memref<3xf32, #tpu.memory_space<smem>>
    %c1_7 = arith.constant 1 : index
    %13 = memref.load %arg1[%c1_7] : memref<3xf32, #tpu.memory_space<smem>>
    %c2_8 = arith.constant 2 : index
    %14 = memref.load %arg1[%c2_8] : memref<3xf32, #tpu.memory_space<smem>>
    %c0_9 = arith.constant 0 : index
    %c0_10 = arith.constant 0 : index
    %15 = vector.load %arg3[%c0_9, %c0_10] : memref<32x4xf32, #tpu.memory_space<vmem>>, vector<32x4xf32>
    %cst_11 = arith.constant dense<0.000000e+00> : vector<32x128xf32>
    %16 = tpu.matmul %15, %8, %cst_11 {dimension_numbers = #tpu.dot_dimension_numbers<[1], [0], [0], [1], [0, 0, 1, 1], [], []>} : vector<32x4xf32>, vector<4x128xf32>, vector<32x128xf32> -> vector<32x128xf32>
    %17 = vector.broadcast %9 : vector<32x1xf32> to vector<32x128xf32>
    %18 = arith.addf %16, %17 : vector<32x128xf32>
    %cst_12 = arith.constant 0.000000e+00 : f32
    %19 = vector.broadcast %cst_12 : f32 to vector<32x128xf32>
    %20 = arith.cmpf oge, %18, %19 : vector<32x128xf32>
    %21 = vector.broadcast %12 : f32 to vector<32x128xf32>
    %22 = arith.mulf %21, %18 : vector<32x128xf32>
    %23 = arith.select %20, %18, %22 : vector<32x128xi1>, vector<32x128xf32>
    %c0_13 = arith.constant 0 : index
    %c0_14 = arith.constant 0 : index
    %24 = vector.load %arg4[%c0_13, %c0_14] : memref<32x32xf32, #tpu.memory_space<vmem>>, vector<32x32xf32>
    %cst_15 = arith.constant dense<0.000000e+00> : vector<32x128xf32>
    %25 = tpu.matmul %24, %23, %cst_15 {dimension_numbers = #tpu.dot_dimension_numbers<[1], [0], [0], [1], [0, 0, 1, 1], [], []>} : vector<32x32xf32>, vector<32x128xf32>, vector<32x128xf32> -> vector<32x128xf32>
    %26 = vector.broadcast %10 : vector<32x1xf32> to vector<32x128xf32>
    %27 = arith.addf %25, %26 : vector<32x128xf32>
    %cst_16 = arith.constant 0.000000e+00 : f32
    %28 = vector.broadcast %cst_16 : f32 to vector<32x128xf32>
    %29 = arith.cmpf oge, %27, %28 : vector<32x128xf32>
    %30 = vector.broadcast %13 : f32 to vector<32x128xf32>
    %31 = arith.mulf %30, %27 : vector<32x128xf32>
    %32 = arith.select %29, %27, %31 : vector<32x128xi1>, vector<32x128xf32>
    %33 = vector.broadcast %11 : vector<32x1xf32> to vector<32x128xf32>
    %34 = arith.mulf %32, %33 : vector<32x128xf32>
    %cst_17 = arith.constant dense<0.000000e+00> : vector<128xf32>
    %35 = vector.multi_reduction <add>, %34, %cst_17 [0] : vector<32x128xf32> to vector<128xf32>
    %36 = vector.shape_cast %35 : vector<128xf32> to vector<1x128xf32>
    %37 = vector.broadcast %14 : f32 to vector<1x128xf32>
    %38 = arith.addf %36, %37 : vector<1x128xf32>
    %c0_18 = arith.constant 0 : index
    %c0_19 = arith.constant 0 : index
    %39 = vector.load %arg6[%c0_18, %c0_19] : memref<1x128xf32, #tpu.memory_space<vmem>>, vector<1x128xf32>
    tpu.vector_store %arg6[%c0_18, %c0_19], %38 {strides = array<i32>} : memref<1x128xf32, #tpu.memory_space<vmem>>, vector<1x128xf32>,
    return
  }
  func.func @transform_0(%arg0: i32) -> i32 {
    %c0_i32 = arith.constant 0 : i32
    %c0_i32_0 = arith.constant 0 : i32
    return %c0_i32 : i32
  }
  func.func @transform_1(%arg0: i32) -> (i32, i32) {
    %c0_i32 = arith.constant 0 : i32
    %c0_i32_0 = arith.constant 0 : i32
    return %c0_i32, %arg0 : i32, i32
  }
  func.func @transform_2(%arg0: i32) -> (i32, i32) {
    %c0_i32 = arith.constant 0 : i32
    %c0_i32_0 = arith.constant 0 : i32
    %c0_i32_1 = arith.constant 0 : i32
    return %c0_i32, %c0_i32_0 : i32, i32
  }
  func.func @transform_3(%arg0: i32) -> (i32, i32) {
    %c0_i32 = arith.constant 0 : i32
    %c0_i32_0 = arith.constant 0 : i32
    %c0_i32_1 = arith.constant 0 : i32
    return %c0_i32, %c0_i32_0 : i32, i32
  }
  func.func @transform_4(%arg0: i32) -> (i32, i32) {
    %c0_i32 = arith.constant 0 : i32
    %c0_i32_0 = arith.constant 0 : i32
    %c0_i32_1 = arith.constant 0 : i32
    return %c0_i32, %c0_i32_0 : i32, i32
  }
  func.func @transform_5(%arg0: i32) -> (i32, i32) {
    %c0_i32 = arith.constant 0 : i32
    %c0_i32_0 = arith.constant 0 : i32
    return %c0_i32, %arg0 : i32, i32
  }
}

</mosaic_0001>

<llo_original>
// kernel: tpu_custom_call.1
$region0: #{tpu_custom_call.1}
  #allocation0 [shape = 'u32[]', space=smem, size = 0x4, offset = 0x4, fixed_abs, tag = 'smem constant byte address 0x4 - core index']
  #allocation1 [shape = 'u32[144,128]{1,0:T(1,128)}', space=vmem, size = 0x12000, scoped, tag = 'internal scratch']
  %s0 = inlined_call_operand.vmem [shape: f32[3], index: 0, kind: input, shape index: {}]
  %s1 = inlined_call_operand.vmem [shape: f32[4,128], index: 1, kind: input, shape index: {}]
  %s2 = inlined_call_operand.vmem [shape: f32[32,4], index: 2, kind: input, shape index: {}]
  %s3 = inlined_call_operand.vmem [shape: f32[32,32], index: 3, kind: input, shape index: {}]
  %s4 = inlined_call_operand.vmem [shape: f32[32,3], index: 4, kind: input, shape index: {}]
  %s5 = inlined_call_operand.hbm [shape: f32[1,128], index: 5, kind: output, shape index: {}]
  %s6 = sld [smem:[#allocation0]]
  $region34: #{tpu_custom_call.1} parent=0
    _
  %s8 = ssub.s32 1, %s6
  %s9 = scalar_select 0, %s8, %s6
  $region1: #{tpu_custom_call.1} parent=0
    #allocation2 [shape = 'u8[512]{0}', space=smem, size = 0x200, scoped, tag = 'input window, operand 0, single buffered']
    #allocation3 [shape = 's32[1]{0}', space=sflag, size = 0x4, scoped, tag = 'scoped memory for tpu_custom_call.1']
    #allocation4 [shape = 's32[1]{0}', space=sflag, size = 0x4, scoped, tag = 'scoped memory for tpu_custom_call.1']
    #allocation5 [shape = 'u8[512]{0}', space=vmem, size = 0x400, scoped, tag = 'output window, operand 0, single buffered']
    %10 = vsyncpa [#allocation4], 0
    %11 = vsyncpa [#allocation3], 0
    // Predicated region
    $region2: #{tpu_custom_call.1} parent=1 // pred_check
      _
    $region3: #{tpu_custom_call.1} parent=1 // pred_check_branch
      %13 = sbr.rel (0) target = $region5
    $region4: #{tpu_custom_call.1} parent=1 // pred_region
      %s15 = ssub.s32 16, 16
      %16 = vsyncadd [#allocation4], %s15
      %s18 = sshll.u32 %s0, 4
      %s19 = int_to_ptr.vmem [resolvable:$true] %s18
      %21 = dma.vmem_to_smem %s19, 16, [#allocation2], [#allocation4]
    $region5: #{tpu_custom_call.1} parent=1 // pred_fallthru
      _
    // Predicated region
    $region6: #{tpu_custom_call.1} parent=1 // pred_check
      _
    $region7: #{tpu_custom_call.1} parent=1 // pred_check_branch
      %23 = sbr.rel (0) target = $region9
    $region8: #{tpu_custom_call.1} parent=1 // pred_region
      _
    $region9: #{tpu_custom_call.1} parent=1 // pred_fallthru
      _
    // Predicated region
    $region10: #{tpu_custom_call.1} parent=1 // pred_check
      _
    $region11: #{tpu_custom_call.1} parent=1 // pred_check_branch
      %25 = sbr.rel (0) target = $region13
    $region12: #{tpu_custom_call.1} parent=1 // pred_region
      _
    $region13: #{tpu_custom_call.1} parent=1 // pred_fallthru
      _
    // Predicated region
    $region14: #{tpu_custom_call.1} parent=1 // pred_check
      _
    $region15: #{tpu_custom_call.1} parent=1 // pred_check_branch
      %27 = sbr.rel (0) target = $region17
    $region16: #{tpu_custom_call.1} parent=1 // pred_region
      _
    $region17: #{tpu_custom_call.1} parent=1 // pred_fallthru
      _
    // Predicated region
    $region18: #{tpu_custom_call.1} parent=1 // pred_check
      _
    $region19: #{tpu_custom_call.1} parent=1 // pred_check_branch
      %29 = sbr.rel (0) target = $region21
    $region20: #{tpu_custom_call.1} parent=1 // pred_region
      _
    $region21: #{tpu_custom_call.1} parent=1 // pred_fallthru
      _
    // Predicated region
    $region22: #{tpu_custom_call.1} parent=1 // pred_check
      _
    $region23: #{tpu_custom_call.1} parent=1 // pred_check_branch
      %31 = sbr.rel (0) target = $region25
    $region24: #{tpu_custom_call.1} parent=1 // pred_region
      %32 = dma.done [#allocation4], 16
    $region25: #{tpu_custom_call.1} parent=1 // pred_fallthru
      _
    %33 = sfence
    %v34 = vld [vmem:[%s1] sm:$0xf]
    %v35 = vmul.f32 %v34, %v34
    %vm36 = vcmask 1043456
    %v37 = vsel %vm36, %v35, 0.0
    %v38 = vrot.slane %v37, 4
    %v39 = vadd.f32 %v37, %v38
    %v40 = vrot.slane %v39, 2
    %v41 = vadd.f32 %v39, %v40
    %v42 = vrot.slane %v41, 1
    %v43 = vadd.f32 %v41, %v42
    %v44 = vmax.f32 %v43, 1e-24
    %v45 = vrsqrt.pop %v44
    %v46 = vmul.f32 %v34, %v45
    %v47 = vld [vmem:[%s4] sm:$0xff]
    %v48 = vld [vmem:[%s4 + $0x8] sm:$0xff]
    %v49 = vld [vmem:[%s4 + $0x10] sm:$0xff]
    %v50 = vld [vmem:[%s4 + $0x18] sm:$0xff]
    %s51 = sld [smem:[#allocation2]]
    %s52 = sld [smem:[#allocation2 + $0x1]]
    %s53 = sld [smem:[#allocation2 + $0x2]]
    %v54 = vld [vmem:[%s2] sm:$0xff]
    %v55 = vld [vmem:[%s2 + $0x8] sm:$0xff]
    %v56 = vld [vmem:[%s2 + $0x10] sm:$0xff]
    %v57 = vld [vmem:[%s2 + $0x18] sm:$0xff]
    %59 = vset.pattern.permute.xlu0 0
    %60 = vperm.xlu0 %59, %v47
    %v61 = vpop.permute.xlu0 %60
    %64 = vset.pattern.permute.xlu0 0
    %65 = vperm.xlu0 %64, %v48
    %v66 = vpop.permute.xlu0 %65
    %69 = vset.pattern.permute.xlu0 0
    %70 = vperm.xlu0 %69, %v49
    %v71 = vpop.permute.xlu0 %70
    %74 = vset.pattern.permute.xlu0 0
    %75 = vperm.xlu0 %74, %v50
    %v76 = vpop.permute.xlu0 %75
    %vm78 = vcmask 31744
    %v80 = vsel %vm78, %v54, 0
    %v83 = vsel %vm78, %v55, 0
    %v86 = vsel %vm78, %v56, 0
    %v89 = vsel %vm78, %v57, 0
    %v92 = vsel %vm36, %v46, 0
    %94 = vmatprep.subr.mxu0 0.0
    %95 = vmatpush1.msra.mxu0 %v92
    %96 = vmatprep.subr.mxu0 0.0
    %97 = vmatpush1.msra.mxu0 0.0
    %98 = vmatprep.subr.mxu0 0.0
    %99 = vmatpush1.msra.mxu0 0.0
    %100 = vmatprep.subr.mxu0 0.0
    %101 = vmatpush1.msra.mxu0 0.0
    %102 = vmatprep.subr.mxu0 0.0
    %103 = vmatpush1.msra.mxu0 0.0
    %104 = vmatprep.subr.mxu0 0.0
    %105 = vmatpush1.msra.mxu0 0.0
    %106 = vmatprep.subr.mxu0 0.0
    %107 = vmatpush1.msra.mxu0 0.0
    %108 = vmatprep.subr.mxu0 0.0
    %109 = vmatpush1.msra.mxu0 0.0
    %110 = vmatprep.subr.mxu0 0.0
    %111 = vmatpush1.msra.mxu0 0.0
    %112 = vmatprep.subr.mxu0 0.0
    %113 = vmatpush1.msra.mxu0 0.0
    %114 = vmatprep.subr.mxu0 0.0
    %115 = vmatpush1.msra.mxu0 0.0
    %116 = vmatprep.subr.mxu0 0.0
    %117 = vmatpush1.msra.mxu0 0.0
    %118 = vmatprep.subr.mxu0 0.0
    %119 = vmatpush1.msra.mxu0 0.0
    %120 = vmatprep.subr.mxu0 0.0
    %121 = vmatpush1.msra.mxu0 0.0
    %122 = vmatprep.subr.mxu0 0.0
    %123 = vmatpush1.msra.mxu0 0.0
    %124 = vmatprep.subr.mxu0 0.0
    %125 = vmatpush1.msra.mxu0 0.0
    %126 = vmatprep.subr.mxu0 0.0
    %127 = vmatpush1.msra.mxu0 0.0
    %128 = vmatprep.subr.mxu0 0.0
    %129 = vmatpush1.msra.mxu0 0.0
    %130 = vmatprep.subr.mxu0 0.0
    %131 = vmatpush1.msra.mxu0 0.0
    %132 = vmatprep.subr.mxu0 0.0
    %133 = vmatpush1.msra.mxu0 0.0
    %134 = vmatprep.subr.mxu0 0.0
    %135 = vmatpush1.msra.mxu0 0.0
    %136 = vmatprep.subr.mxu0 0.0
    %137 = vmatpush1.msra.mxu0 0.0
    %138 = vmatprep.subr.mxu0 0.0
    %139 = vmatpush1.msra.mxu0 0.0
    %140 = vmatprep.subr.mxu0 0.0
    %141 = vmatpush1.msra.mxu0 0.0
    %142 = vmatprep.subr.mxu0 0.0
    %143 = vmatpush1.msra.mxu0 0.0
    %144 = vmatprep.subr.mxu0 0.0
    %145 = vmatpush1.msra.mxu0 0.0
    %146 = vmatprep.subr.mxu0 0.0
    %147 = vmatpush1.msra.mxu0 0.0
    %148 = vmatprep.subr.mxu0 0.0
    %149 = vmatpush1.msra.mxu0 0.0
    %150 = vmatprep.subr.mxu0 0.0
    %151 = vmatpush1.msra.mxu0 0.0
    %152 = vmatprep.subr.mxu0 0.0
    %153 = vmatpush1.msra.mxu0 0.0
    %154 = vmatprep.subr.mxu0 0.0
    %155 = vmatpush1.msra.mxu0 0.0
    %156 = vmatprep.subr.mxu0 0.0
    %157 = vmatpush1.msra.mxu0 0.0
    %158 = vmatprep.mubr.f32.mxu0 0.0
    %159 = vmatmul.mubr.f32.gmra.mrb[0].mxu0 %v80
    %v160 = vpop.f32.mrb[0].mxu0
    %v161 = vadd.f32 %v61, %v160
    %v162 = vpop.f32.mrb[0].mxu0
    %163 = vmatprep.mubr.f32.mxu0 0.0
    %164 = vmatmul.mubr.f32.gmra.mrb[0].mxu0 %v83
    %v165 = vpop.f32.mrb[0].mxu0
    %v166 = vadd.f32 %v66, %v165
    %v167 = vpop.f32.mrb[0].mxu0
    %168 = vmatprep.mubr.f32.mxu0 0.0
    %169 = vmatmul.mubr.f32.gmra.mrb[0].mxu0 %v86
    %v170 = vpop.f32.mrb[0].mxu0
    %v171 = vadd.f32 %v71, %v170
    %v172 = vpop.f32.mrb[0].mxu0
    %173 = vmatprep.mubr.f32.mxu0 0.0
    %174 = vmatmul.mubr.f32.gmra.mrb[0].mxu0 %v89
    %v175 = vpop.f32.mrb[0].mxu0
    %v176 = vadd.f32 %v76, %v175
    %v177 = vpop.f32.mrb[0].mxu0
    %178 = vdwg.mxu0
    %vm179 = vcmp.ge.f32.partialorder %v161, 0.0
    %vm180 = vcmp.ge.f32.partialorder %v166, 0.0
    %vm181 = vcmp.ge.f32.partialorder %v171, 0.0
    %vm182 = vcmp.ge.f32.partialorder %v176, 0.0
    %v183 = vstv %s51
    %v184 = vmul.f32 %v183, %v161
    %v185 = vmul.f32 %v183, %v166
    %v186 = vmul.f32 %v183, %v171
    %v187 = vmul.f32 %v183, %v176
    %v188 = vsel %vm179, %v161, %v184
    %v189 = vsel %vm180, %v166, %v185
    %v190 = vsel %vm181, %v171, %v186
    %v191 = vsel %vm182, %v176, %v187
    %v192 = vld [vmem:[%s3] sm:$0xff]
    %v193 = vld [vmem:[%s3 + $0x8] sm:$0xff]
    %v194 = vld [vmem:[%s3 + $0x10] sm:$0xff]
    %v195 = vld [vmem:[%s3 + $0x18] sm:$0xff]
    %196 = vset.pattern.permute.xlu0 1
    %197 = vperm.xlu0 %196, %v47
    %v198 = vpop.permute.xlu0 %197
    %200 = vset.pattern.permute.xlu0 1
    %201 = vperm.xlu0 %200, %v48
    %v202 = vpop.permute.xlu0 %201
    %204 = vset.pattern.permute.xlu0 1
    %205 = vperm.xlu0 %204, %v49
    %v206 = vpop.permute.xlu0 %205
    %208 = vset.pattern.permute.xlu0 1
    %209 = vperm.xlu0 %208, %v50
    %v210 = vpop.permute.xlu0 %209
    %vm212 = vcmask 261120
    %v214 = vsel %vm212, %v192, 0
    %v217 = vsel %vm212, %v193, 0
    %v220 = vsel %vm212, %v194, 0
    %v223 = vsel %vm212, %v195, 0
    %225 = vmatprep.subr.mxu0 0.0
    %226 = vmatpush1.msra.mxu0 %v188
    %227 = vmatprep.subr.mxu0 0.0
    %228 = vmatpush1.msra.mxu0 %v189
    %229 = vmatprep.subr.mxu0 0.0
    %230 = vmatpush1.msra.mxu0 %v190
    %231 = vmatprep.subr.mxu0 0.0
    %232 = vmatpush1.msra.mxu0 %v191
    %233 = vmatprep.subr.mxu0 0.0
    %234 = vmatpush1.msra.mxu0 0.0
    %235 = vmatprep.subr.mxu0 0.0
    %236 = vmatpush1.msra.mxu0 0.0
    %237 = vmatprep.subr.mxu0 0.0
    %238 = vmatpush1.msra.mxu0 0.0
    %239 = vmatprep.subr.mxu0 0.0
    %240 = vmatpush1.msra.mxu0 0.0
    %241 = vmatprep.subr.mxu0 0.0
    %242 = vmatpush1.msra.mxu0 0.0
    %243 = vmatprep.subr.mxu0 0.0
    %244 = vmatpush1.msra.mxu0 0.0
    %245 = vmatprep.subr.mxu0 0.0
    %246 = vmatpush1.msra.mxu0 0.0
    %247 = vmatprep.subr.mxu0 0.0
    %248 = vmatpush1.msra.mxu0 0.0
    %249 = vmatprep.subr.mxu0 0.0
    %250 = vmatpush1.msra.mxu0 0.0
    %251 = vmatprep.subr.mxu0 0.0
    %252 = vmatpush1.msra.mxu0 0.0
    %253 = vmatprep.subr.mxu0 0.0
    %254 = vmatpush1.msra.mxu0 0.0
    %255 = vmatprep.subr.mxu0 0.0
    %256 = vmatpush1.msra.mxu0 0.0
    %257 = vmatprep.subr.mxu0 0.0
    %258 = vmatpush1.msra.mxu0 0.0
    %259 = vmatprep.subr.mxu0 0.0
    %260 = vmatpush1.msra.mxu0 0.0
    %261 = vmatprep.subr.mxu0 0.0
    %262 = vmatpush1.msra.mxu0 0.0
    %263 = vmatprep.subr.mxu0 0.0
    %264 = vmatpush1.msra.mxu0 0.0
    %265 = vmatprep.subr.mxu0 0.0
    %266 = vmatpush1.msra.mxu0 0.0
    %267 = vmatprep.subr.mxu0 0.0
    %268 = vmatpush1.msra.mxu0 0.0
    %269 = vmatprep.subr.mxu0 0.0
    %270 = vmatpush1.msra.mxu0 0.0
    %271 = vmatprep.subr.mxu0 0.0
    %272 = vmatpush1.msra.mxu0 0.0
    %273 = vmatprep.subr.mxu0 0.0
    %274 = vmatpush1.msra.mxu0 0.0
    %275 = vmatprep.subr.mxu0 0.0
    %276 = vmatpush1.msra.mxu0 0.0
    %277 = vmatprep.subr.mxu0 0.0
    %278 = vmatpush1.msra.mxu0 0.0
    %279 = vmatprep.subr.mxu0 0.0
    %280 = vmatpush1.msra.mxu0 0.0
    %281 = vmatprep.subr.mxu0 0.0
    %282 = vmatpush1.msra.mxu0 0.0
    %283 = vmatprep.subr.mxu0 0.0
    %284 = vmatpush1.msra.mxu0 0.0
    %285 = vmatprep.subr.mxu0 0.0
    %286 = vmatpush1.msra.mxu0 0.0
    %287 = vmatprep.subr.mxu0 0.0
    %288 = vmatpush1.msra.mxu0 0.0
    %289 = vmatprep.mubr.f32.mxu0 0.0
    %290 = vmatmul.mubr.f32.gmra.mrb[0].mxu0 %v214
    %v291 = vpop.f32.mrb[0].mxu0
    %v292 = vadd.f32 %v198, %v291
    %v293 = vpop.f32.mrb[0].mxu0
    %294 = vmatprep.mubr.f32.mxu0 0.0
    %295 = vmatmul.mubr.f32.gmra.mrb[0].mxu0 %v217
    %v296 = vpop.f32.mrb[0].mxu0
    %v297 = vadd.f32 %v202, %v296
    %v298 = vpop.f32.mrb[0].mxu0
    %299 = vmatprep.mubr.f32.mxu0 0.0
    %300 = vmatmul.mubr.f32.gmra.mrb[0].mxu0 %v220
    %v301 = vpop.f32.mrb[0].mxu0
    %v302 = vadd.f32 %v206, %v301
    %v303 = vpop.f32.mrb[0].mxu0
    %304 = vmatprep.mubr.f32.mxu0 0.0
    %305 = vmatmul.mubr.f32.gmra.mrb[0].mxu0 %v223
    %v306 = vpop.f32.mrb[0].mxu0
    %v307 = vadd.f32 %v210, %v306
    %v308 = vpop.f32.mrb[0].mxu0
    %309 = vdwg.mxu0
    %vm310 = vcmp.ge.f32.partialorder %v292, 0.0
    %vm311 = vcmp.ge.f32.partialorder %v297, 0.0
    %vm312 = vcmp.ge.f32.partialorder %v302, 0.0
    %vm313 = vcmp.ge.f32.partialorder %v307, 0.0
    %v314 = vstv %s52
    %v315 = vmul.f32 %v314, %v292
    %v316 = vmul.f32 %v314, %v297
    %v317 = vmul.f32 %v314, %v302
    %v318 = vmul.f32 %v314, %v307
    %v319 = vsel %vm310, %v292, %v315
    %v320 = vsel %vm311, %v297, %v316
    %v321 = vsel %vm312, %v302, %v317
    %v322 = vsel %vm313, %v307, %v318
    %323 = vset.pattern.permute.xlu0 2
    %324 = vperm.xlu0 %323, %v47
    %v325 = vpop.permute.xlu0 %324
    %327 = vset.pattern.permute.xlu0 2
    %328 = vperm.xlu0 %327, %v48
    %v329 = vpop.permute.xlu0 %328
    %331 = vset.pattern.permute.xlu0 2
    %332 = vperm.xlu0 %331, %v49
    %v333 = vpop.permute.xlu0 %332
    %335 = vset.pattern.permute.xlu0 2
    %336 = vperm.xlu0 %335, %v50
    %v337 = vpop.permute.xlu0 %336
    %v339 = vmul.f32 %v319, %v325
    %v340 = vmul.f32 %v320, %v329
    %v341 = vmul.f32 %v321, %v333
    %v342 = vmul.f32 %v322, %v337
    %v343 = vadd.f32 %v339, %v340
    %v344 = vadd.f32 %v343, %v341
    %v345 = vadd.f32 %v344, %v342
    %v346 = vrot.slane %v345, 4
    %v347 = vadd.f32 %v345, %v346
    %v348 = vrot.slane %v347, 2
    %v349 = vadd.f32 %v347, %v348
    %v350 = vrot.slane %v349, 1
    %v351 = vadd.f32 %v349, %v350
    %v352 = vstv %s53
    %v353 = vadd.f32 %v351, %v352
    %354 = vst [vmem:[#allocation5] sm:$0x1] %v353
    // Predicated region
    $region26: #{tpu_custom_call.1} parent=1 // pred_check
      _
    $region27: #{tpu_custom_call.1} parent=1 // pred_check_branch
      %356 = sbr.rel (0) target = $region29
    $region28: #{tpu_custom_call.1} parent=1 // pred_region
      %s358 = ssub.s32 16, 16
      %359 = vsyncadd [#allocation3], %s358
      %s361 = sshll.u32 [#allocation5], 4
      %s362 = int_to_ptr.vmem [resolvable:$true] %s361
      %364 = dma.vmem_to_hbm [thread:$0]  %s362, 16, %s5, [#allocation3]
    $region29: #{tpu_custom_call.1} parent=1 // pred_fallthru
      _
    // Predicated region
    $region30: #{tpu_custom_call.1} parent=1 // pred_check
      _
    $region31: #{tpu_custom_call.1} parent=1 // pred_check_branch
      %366 = sbr.rel (0) target = $region33
    $region32: #{tpu_custom_call.1} parent=1 // pred_region
      %367 = dma.done [#allocation3], 16
    $region33: #{tpu_custom_call.1} parent=1 // pred_fallthru
      _
    %368 = vsyncpa [#allocation3], 1
    %369 = vsyncpa [#allocation4], 1

</llo_original>
